<compile_context>
chip_gen: v7x
topology: tpu7x:2x2x1
jax: 0.10.0
libtpu: 0.0.40
codegen_flags: <defaults>
</compile_context>

<pallas_src>
import functools

import jax
import jax.numpy as jnp
from jax.experimental import pallas as pl
from jax.experimental.pallas import tpu as pltpu


def _round_up(x, m):
    return (x + m - 1) // m * m


def _is_multi_tensorcore_chip():
    # v7x has 2 TensorCores per chip; v5e/v6e have 1.
    try:
        kind = jax.devices()[0].device_kind.lower()
    except Exception:
        return False
    return "v7" in kind


def _pick_tile(N, target, mult, prefer_even_steps):
    """Pick a row-tile size.

    Prefers divisors of N (no ragged tail) near `target`, multiples of `mult`
    (bf16 sublane packing); on multi-TC chips prefers an even step count.
    Falls back to `target` with a ragged last block (Pallas masks OOB writes).
    """
    if N <= target:
        if prefer_even_steps and N >= 2 * mult:
            # split into 2 roughly-even steps so both v7x TensorCores get work
            return _round_up(-(-N // 2), mult)
        return N  # single full-extent block (always layout-legal)
    t = max(mult, (target // mult) * mult)
    best = None
    best_even = None
    for cand in range(t, mult - 1, -mult):
        if N % cand == 0:
            if best is None:
                best = cand
            if (N // cand) % 2 == 0:
                best_even = cand
                break
            if not prefer_even_steps:
                break
    if prefer_even_steps and best_even is not None:
        return best_even
    if best is not None:
        return best
    return t  # ragged last block


def _patch_embed_kernel(p_ref, w_ref, c_ref, o_ref, *, eps):
    # p_ref: (TN, K)  patch rows (bf16 or f32)
    # w_ref: (K, E)   flattened conv weight, same dtype as p_ref (resident)
    # c_ref: (3, E)   f32 constants: row0 = conv bias, row1 = LN gamma, row2 = LN beta
    # o_ref: (TN, E)  output tokens (bf16 by default, f32 for exact path)
    y = jnp.dot(p_ref[...], w_ref[...], preferred_element_type=jnp.float32)
    y = y + c_ref[0:1, :]                                  # conv bias

    # Fused single-pass LayerNorm in f32: var = E[y^2] - mean^2 (biased, as torch LN).
    mean = jnp.mean(y, axis=-1, keepdims=True)
    msq = jnp.mean(y * y, axis=-1, keepdims=True)
    var = jnp.maximum(msq - mean * mean, 0.0)
    inv = jax.lax.rsqrt(var + eps)                         # EUP slot, ~free

    o_ref[...] = ((y - mean) * inv * c_ref[1:2, :] + c_ref[2:3, :]).astype(o_ref.dtype)


def patch_embed_forward(x, conv_w, conv_b, ln_gamma, ln_beta, *,
                        patch_size, eps=1e-5, tile_n=None,
                        compute_dtype=jnp.bfloat16, out_dtype=jnp.bfloat16):
    """x: (B, C, H, W) NCHW.  Returns (tokens (B, Hp*Wp, E), (Hp, Wp))."""
    B, C, H, W = x.shape
    p = patch_size
    Hp, Wp = H // p, W // p
    E = conv_w.shape[0]
    K = C * p * p
    N = B * Hp * Wp

    # ---- glue: non-overlapping patches, feature order = (c, kh, kw) ----------
    # (candidate for XLA input fusion into the pallas_call; see allow_input_fusion)
    patches = x.reshape(B, C, Hp, p, Wp, p).transpose(0, 2, 4, 1, 3, 5).reshape(N, K)
    if patches.dtype != compute_dtype:
        patches = patches.astype(compute_dtype)
    w_mat = conv_w.reshape(E, K).T.astype(compute_dtype)                  # (K, E)
    consts = jnp.stack([conv_b, ln_gamma, ln_beta]).astype(jnp.float32)   # (3, E)

    # ---- tiling ---------------------------------------------------------------
    in_bytes = jnp.dtype(compute_dtype).itemsize
    out_bytes = jnp.dtype(out_dtype).itemsize
    mult = 16 if in_bytes < 4 else 8                # sublane packing granularity
    row_bytes = K * in_bytes + E * out_bytes        # HBM bytes moved per token row

    multi_tc = _is_multi_tensorcore_chip()
    if tile_n is None:
        # v5e/v6e: 1024 rows ~85% of HBM roofline; v7x: ~4 MiB moved per grid step.
        tile_n = _round_up((4 << 20) // row_bytes, 1024) if multi_tc else 1024

    # VMEM cap: double-buffered row tiles + resident weight/consts <= ~12 MiB
    # (under the scoped-VMEM default on every generation, incl. v5e's 16 MiB).
    resident_bytes = K * E * in_bytes + 3 * E * 4
    max_tile = max(mult,
                   (((12 << 20) - resident_bytes) // (2 * row_bytes)) // mult * mult)
    tile = _pick_tile(N, min(tile_n, max_tile), mult, prefer_even_steps=multi_tc)
    n_tiles = pl.cdiv(N, tile)

    out = pl.pallas_call(
        functools.partial(_patch_embed_kernel, eps=eps),
        out_shape=jax.ShapeDtypeStruct((N, E), out_dtype),
        grid_spec=pltpu.PrefetchScalarGridSpec(
            num_scalar_prefetch=0,
            grid=(n_tiles,),
            in_specs=[
                pl.BlockSpec((tile, K), lambda i: (i, 0)),   # patch-row tile
                pl.BlockSpec((K, E), lambda i: (0, 0)),      # weight (resident)
                pl.BlockSpec((3, E), lambda i: (0, 0)),      # bias/gamma/beta (resident)
            ],
            out_specs=pl.BlockSpec((tile, E), lambda i: (i, 0)),
        ),
        compiler_params=pltpu.CompilerParams(
            dimension_semantics=("parallel",),
            # Let XLA fuse the patch-extraction reshape/transpose/cast into the
            # pallas_call's first operand (best effort; no-op if not fused).
            allow_input_fusion=[True, False, False],
        ),
    )(patches, w_mat, consts)

    tokens = out.reshape(B, Hp * Wp, E)
    return tokens, (Hp, Wp)


def _reference(x, conv_w, conv_b, ln_gamma, ln_beta, *, patch_size, eps=1e-5):
    # plain-JAX f32 reference (strided conv via dot, then LayerNorm)
    B, C, H, W = x.shape
    p = patch_size
    Hp, Wp = H // p, W // p
    E = conv_w.shape[0]
    patches = x.reshape(B, C, Hp, p, Wp, p).transpose(0, 2, 4, 1, 3, 5)
    patches = patches.reshape(B, Hp * Wp, C * p * p)
    y = jnp.einsum('bnk,ek->bne', patches, conv_w.reshape(E, -1)) + conv_b
    mean = jnp.mean(y, axis=-1, keepdims=True)
    var = jnp.mean((y - mean) ** 2, axis=-1, keepdims=True)
    return (y - mean) / jnp.sqrt(var + eps) * ln_gamma + ln_beta


if __name__ == "__main__":
    # small shapes consistent with the module: img=16, patch=4, in_chans=4, embed_dim=32
    B, C, IMG, P, E = 2, 4, 16, 4, 32

    key = jax.random.PRNGKey(0)
    kx, kw, kb = jax.random.split(key, 3)

    x = jax.random.normal(kx, (B, C, IMG, IMG), dtype=jnp.float32)
    conv_w = jax.random.normal(kw, (E, C, P, P), dtype=jnp.float32) * 0.05
    conv_b = jax.random.normal(kb, (E,), dtype=jnp.float32) * 0.05
    ln_gamma = jnp.ones((E,), dtype=jnp.float32)
    ln_beta = jnp.zeros((E,), dtype=jnp.float32)

    ref = _reference(x, conv_w, conv_b, ln_gamma, ln_beta, patch_size=P)

    # 1) exact path (f32 MXU operands, f32 tokens) — tight correctness check
    tok_f32, (Hp, Wp) = patch_embed_forward(
        x, conv_w, conv_b, ln_gamma, ln_beta,
        patch_size=P, compute_dtype=jnp.float32, out_dtype=jnp.float32)
    tok_f32 = jax.block_until_ready(tok_f32)
    assert tok_f32.shape == (B, (IMG // P) * (IMG // P), E)
    assert (Hp, Wp) == (IMG // P, IMG // P)
    assert jnp.allclose(tok_f32, ref, atol=1e-4, rtol=1e-4), "f32 path mismatch"

    # 2) default perf path (bf16 MXU operands + bf16 token output, f32 LN math)
    tok_bf16, _ = patch_embed_forward(
        x, conv_w, conv_b, ln_gamma, ln_beta, patch_size=P)
    tok_bf16 = jax.block_until_ready(tok_bf16)
    assert tok_bf16.shape == (B, (IMG // P) * (IMG // P), E)
    assert tok_bf16.dtype == jnp.bfloat16
    assert jnp.allclose(tok_bf16.astype(jnp.float32), ref,
                        atol=8e-2, rtol=8e-2), "bf16 path mismatch"

    print("KERNEL_OK")
</pallas_src>

<mosaic_0001>
module attributes {stable_mosaic.version = 11 : i64} {
  func.func @_patch_embed_kernel(%arg0: i32, %arg1: memref<32x64xf32, #tpu.memory_space<vmem>>, %arg2: memref<64x32xf32, #tpu.memory_space<vmem>>, %arg3: memref<3x32xf32, #tpu.memory_space<vmem>>, %arg4: memref<32x32xf32, #tpu.memory_space<vmem>>) attributes {dimension_semantics = [#tpu.dimension_semantics<parallel>], iteration_bounds = array<i64: 1>, scalar_prefetch = 0 : i64, scratch_operands = 0 : i64, tpu.core_type = #tpu.core_type<tc>, window_params = [{transform_indices = @transform_0, window_bounds = array<i64: 32, 64>}, {pipeline_mode = #tpu.pipeline_mode<synchronous>, transform_indices = @transform_1, window_bounds = array<i64: 64, 32>}, {pipeline_mode = #tpu.pipeline_mode<synchronous>, transform_indices = @transform_2, window_bounds = array<i64: 3, 32>}, {transform_indices = @transform_3, window_bounds = array<i64: 32, 32>}]} {
    %c0 = arith.constant 0 : index
    %c0_0 = arith.constant 0 : index
    %0 = vector.load %arg1[%c0, %c0_0] : memref<32x64xf32, #tpu.memory_space<vmem>>, vector<32x64xf32>
    %c0_1 = arith.constant 0 : index
    %c0_2 = arith.constant 0 : index
    %1 = vector.load %arg2[%c0_1, %c0_2] : memref<64x32xf32, #tpu.memory_space<vmem>>, vector<64x32xf32>
    %cst = arith.constant dense<0.000000e+00> : vector<32x32xf32>
    %2 = tpu.matmul %0, %1, %cst {dimension_numbers = #tpu.dot_dimension_numbers<[1], [0], [0], [1], [0, 0, 1, 1], [], []>} : vector<32x64xf32>, vector<64x32xf32>, vector<32x32xf32> -> vector<32x32xf32>
    %c0_3 = arith.constant 0 : index
    %c0_4 = arith.constant 0 : index
    %3 = vector.load %arg3[%c0_3, %c0_4] : memref<3x32xf32, #tpu.memory_space<vmem>>, vector<1x32xf32>
    %4 = vector.broadcast %3 : vector<1x32xf32> to vector<32x32xf32>
    %5 = arith.addf %2, %4 : vector<32x32xf32>
    %cst_5 = arith.constant dense<0.000000e+00> : vector<32xf32>
    %6 = vector.multi_reduction <add>, %5, %cst_5 [1] : vector<32x32xf32> to vector<32xf32>
    %7 = vector.shape_cast %6 : vector<32xf32> to vector<32x1xf32>
    %cst_6 = arith.constant 3.200000e+01 : f32
    %8 = vector.broadcast %cst_6 : f32 to vector<32x1xf32>
    %9 = arith.divf %7, %8 : vector<32x1xf32>
    %10 = arith.mulf %5, %5 : vector<32x32xf32>
    %cst_7 = arith.constant dense<0.000000e+00> : vector<32xf32>
    %11 = vector.multi_reduction <add>, %10, %cst_7 [1] : vector<32x32xf32> to vector<32xf32>
    %12 = vector.shape_cast %11 : vector<32xf32> to vector<32x1xf32>
    %cst_8 = arith.constant 3.200000e+01 : f32
    %13 = vector.broadcast %cst_8 : f32 to vector<32x1xf32>
    %14 = arith.divf %12, %13 : vector<32x1xf32>
    %15 = arith.mulf %9, %9 : vector<32x1xf32>
    %16 = arith.subf %14, %15 : vector<32x1xf32>
    %cst_9 = arith.constant 0.000000e+00 : f32
    %17 = vector.broadcast %cst_9 : f32 to vector<32x1xf32>
    %18 = arith.maximumf %16, %17 : vector<32x1xf32>
    %cst_10 = arith.constant 9.99999974E-6 : f32
    %19 = vector.broadcast %cst_10 : f32 to vector<32x1xf32>
    %20 = arith.addf %18, %19 : vector<32x1xf32>
    %21 = math.rsqrt %20 : vector<32x1xf32>
    %22 = vector.broadcast %9 : vector<32x1xf32> to vector<32x32xf32>
    %23 = arith.subf %5, %22 : vector<32x32xf32>
    %24 = vector.broadcast %21 : vector<32x1xf32> to vector<32x32xf32>
    %25 = arith.mulf %23, %24 : vector<32x32xf32>
    %c1 = arith.constant 1 : index
    %c0_11 = arith.constant 0 : index
    %26 = vector.load %arg3[%c1, %c0_11] : memref<3x32xf32, #tpu.memory_space<vmem>>, vector<1x32xf32>
    %27 = vector.broadcast %26 : vector<1x32xf32> to vector<32x32xf32>
    %28 = arith.mulf %25, %27 : vector<32x32xf32>
    %c2 = arith.constant 2 : index
    %c0_12 = arith.constant 0 : index
    %29 = vector.load %arg3[%c2, %c0_12] : memref<3x32xf32, #tpu.memory_space<vmem>>, vector<1x32xf32>
    %30 = vector.broadcast %29 : vector<1x32xf32> to vector<32x32xf32>
    %31 = arith.addf %28, %30 : vector<32x32xf32>
    %c0_13 = arith.constant 0 : index
    %c0_14 = arith.constant 0 : index
    %32 = vector.load %arg4[%c0_13, %c0_14] : memref<32x32xf32, #tpu.memory_space<vmem>>, vector<32x32xf32>
    tpu.vector_store %arg4[%c0_13, %c0_14], %31 {strides = array<i32>} : memref<32x32xf32, #tpu.memory_space<vmem>>, vector<32x32xf32>,
    return
  }
  func.func @transform_0(%arg0: i32) -> (i32, i32) {
    %c0_i32 = arith.constant 0 : i32
    %c0_i32_0 = arith.constant 0 : i32
    return %arg0, %c0_i32 : i32, i32
  }
  func.func @transform_1(%arg0: i32) -> (i32, i32) {
    %c0_i32 = arith.constant 0 : i32
    %c0_i32_0 = arith.constant 0 : i32
    %c0_i32_1 = arith.constant 0 : i32
    return %c0_i32, %c0_i32_0 : i32, i32
  }
  func.func @transform_2(%arg0: i32) -> (i32, i32) {
    %c0_i32 = arith.constant 0 : i32
    %c0_i32_0 = arith.constant 0 : i32
    %c0_i32_1 = arith.constant 0 : i32
    return %c0_i32, %c0_i32_0 : i32, i32
  }
  func.func @transform_3(%arg0: i32) -> (i32, i32) {
    %c0_i32 = arith.constant 0 : i32
    %c0_i32_0 = arith.constant 0 : i32
    return %arg0, %c0_i32 : i32, i32
  }
}

</mosaic_0001>

<llo_original>
// kernel: tpu_custom_call.1
$region0: #{tpu_custom_call.1}
  #allocation0 [shape = 'u32[]', space=smem, size = 0x4, offset = 0x4, fixed_abs, tag = 'smem constant byte address 0x4 - core index']
  #allocation1 [shape = 'u32[144,128]{1,0:T(1,128)}', space=vmem, size = 0x12000, scoped, tag = 'internal scratch']
  %s0 = inlined_call_operand.vmem [shape: f32[32,64], index: 0, kind: input, shape index: {}]
  %s1 = inlined_call_operand.vmem [shape: f32[64,32], index: 1, kind: input, shape index: {}]
  %s2 = inlined_call_operand.vmem [shape: f32[3,32], index: 2, kind: input, shape index: {}]
  %s3 = inlined_call_operand.hbm [shape: f32[32,32], index: 3, kind: output, shape index: {}]
  %s4 = sld [smem:[#allocation0]]
  $region22: #{tpu_custom_call.1} parent=0
    _
  %s6 = ssub.s32 1, %s4
  %s7 = scalar_select 0, %s6, %s4
  $region1: #{tpu_custom_call.1} parent=0
    #allocation2 [shape = 'u8[16384]{0}', space=vmem, size = 0x4000, scoped, tag = 'output window, operand 0, single buffered']
    #allocation3 [shape = 's32[1]{0}', space=sflag, size = 0x4, scoped, tag = 'scoped memory for tpu_custom_call.1']
    %8 = vsyncpa [#allocation3], 0
    // Predicated region
    $region2: #{tpu_custom_call.1} parent=1 // pred_check
      _
    $region3: #{tpu_custom_call.1} parent=1 // pred_check_branch
      %10 = sbr.rel (0) target = $region5
    $region4: #{tpu_custom_call.1} parent=1 // pred_region
      _
    $region5: #{tpu_custom_call.1} parent=1 // pred_fallthru
      _
    // Predicated region
    $region6: #{tpu_custom_call.1} parent=1 // pred_check
      _
    $region7: #{tpu_custom_call.1} parent=1 // pred_check_branch
      %12 = sbr.rel (0) target = $region9
    $region8: #{tpu_custom_call.1} parent=1 // pred_region
      _
    $region9: #{tpu_custom_call.1} parent=1 // pred_fallthru
      _
    // Predicated region
    $region10: #{tpu_custom_call.1} parent=1 // pred_check
      _
    $region11: #{tpu_custom_call.1} parent=1 // pred_check_branch
      %14 = sbr.rel (0) target = $region13
    $region12: #{tpu_custom_call.1} parent=1 // pred_region
      _
    $region13: #{tpu_custom_call.1} parent=1 // pred_fallthru
      _
    %v15 = vld [vmem:[%s0] sm:$0xff]
    %v16 = vld [vmem:[%s0 + $0x8] sm:$0xff]
    %v17 = vld [vmem:[%s0 + $0x10] sm:$0xff]
    %v18 = vld [vmem:[%s0 + $0x18] sm:$0xff]
    %v19 = vld [vmem:[%s1] sm:$0xff]
    %v20 = vld [vmem:[%s1 + $0x8] sm:$0xff]
    %v21 = vld [vmem:[%s1 + $0x10] sm:$0xff]
    %v22 = vld [vmem:[%s1 + $0x18] sm:$0xff]
    %v23 = vld [vmem:[%s1 + $0x20] sm:$0xff]
    %v24 = vld [vmem:[%s1 + $0x28] sm:$0xff]
    %v25 = vld [vmem:[%s1 + $0x30] sm:$0xff]
    %v26 = vld [vmem:[%s1 + $0x38] sm:$0xff]
    %v27 = vld [vmem:[%s2] sm:$0x1]
    %v28 = vlaneseq
    %v29 = vshrl.u32 %v28, 7
    %v30 = vsub.s32 0, %v29
    %v31 = vrot.slane %v27, %v30
    %vm32 = vcmask 523264
    %v34 = vsel %vm32, %v15, 0
    %v37 = vsel %vm32, %v16, 0
    %v40 = vsel %vm32, %v17, 0
    %v43 = vsel %vm32, %v18, 0
    %45 = vmatprep.subr.mxu0 0.0
    %46 = vmatpush1.msra.mxu0 %v19
    %47 = vmatprep.subr.mxu0 0.0
    %48 = vmatpush1.msra.mxu0 %v20
    %49 = vmatprep.subr.mxu0 0.0
    %50 = vmatpush1.msra.mxu0 %v21
    %51 = vmatprep.subr.mxu0 0.0
    %52 = vmatpush1.msra.mxu0 %v22
    %53 = vmatprep.subr.mxu0 0.0
    %54 = vmatpush1.msra.mxu0 %v23
    %55 = vmatprep.subr.mxu0 0.0
    %56 = vmatpush1.msra.mxu0 %v24
    %57 = vmatprep.subr.mxu0 0.0
    %58 = vmatpush1.msra.mxu0 %v25
    %59 = vmatprep.subr.mxu0 0.0
    %60 = vmatpush1.msra.mxu0 %v26
    %61 = vmatprep.subr.mxu0 0.0
    %62 = vmatpush1.msra.mxu0 0.0
    %63 = vmatprep.subr.mxu0 0.0
    %64 = vmatpush1.msra.mxu0 0.0
    %65 = vmatprep.subr.mxu0 0.0
    %66 = vmatpush1.msra.mxu0 0.0
    %67 = vmatprep.subr.mxu0 0.0
    %68 = vmatpush1.msra.mxu0 0.0
    %69 = vmatprep.subr.mxu0 0.0
    %70 = vmatpush1.msra.mxu0 0.0
    %71 = vmatprep.subr.mxu0 0.0
    %72 = vmatpush1.msra.mxu0 0.0
    %73 = vmatprep.subr.mxu0 0.0
    %74 = vmatpush1.msra.mxu0 0.0
    %75 = vmatprep.subr.mxu0 0.0
    %76 = vmatpush1.msra.mxu0 0.0
    %77 = vmatprep.subr.mxu0 0.0
    %78 = vmatpush1.msra.mxu0 0.0
    %79 = vmatprep.subr.mxu0 0.0
    %80 = vmatpush1.msra.mxu0 0.0
    %81 = vmatprep.subr.mxu0 0.0
    %82 = vmatpush1.msra.mxu0 0.0
    %83 = vmatprep.subr.mxu0 0.0
    %84 = vmatpush1.msra.mxu0 0.0
    %85 = vmatprep.subr.mxu0 0.0
    %86 = vmatpush1.msra.mxu0 0.0
    %87 = vmatprep.subr.mxu0 0.0
    %88 = vmatpush1.msra.mxu0 0.0
    %89 = vmatprep.subr.mxu0 0.0
    %90 = vmatpush1.msra.mxu0 0.0
    %91 = vmatprep.subr.mxu0 0.0
    %92 = vmatpush1.msra.mxu0 0.0
    %93 = vmatprep.subr.mxu0 0.0
    %94 = vmatpush1.msra.mxu0 0.0
    %95 = vmatprep.subr.mxu0 0.0
    %96 = vmatpush1.msra.mxu0 0.0
    %97 = vmatprep.subr.mxu0 0.0
    %98 = vmatpush1.msra.mxu0 0.0
    %99 = vmatprep.subr.mxu0 0.0
    %100 = vmatpush1.msra.mxu0 0.0
    %101 = vmatprep.subr.mxu0 0.0
    %102 = vmatpush1.msra.mxu0 0.0
    %103 = vmatprep.subr.mxu0 0.0
    %104 = vmatpush1.msra.mxu0 0.0
    %105 = vmatprep.subr.mxu0 0.0
    %106 = vmatpush1.msra.mxu0 0.0
    %107 = vmatprep.subr.mxu0 0.0
    %108 = vmatpush1.msra.mxu0 0.0
    %109 = vmatprep.mubr.f32.mxu0 0.0
    %110 = vmatmul.mubr.f32.gmra.mrb[0].mxu0 %v34
    %v111 = vpop.f32.mrb[0].mxu0
    %v112 = vadd.f32 %v31, %v111
    %v113 = vpop.f32.mrb[0].mxu0
    %114 = vmatprep.mubr.f32.mxu0 0.0
    %115 = vmatmul.mubr.f32.gmra.mrb[0].mxu0 %v37
    %v116 = vpop.f32.mrb[0].mxu0
    %v117 = vadd.f32 %v31, %v116
    %v118 = vpop.f32.mrb[0].mxu0
    %119 = vmatprep.mubr.f32.mxu0 0.0
    %120 = vmatmul.mubr.f32.gmra.mrb[0].mxu0 %v40
    %v121 = vpop.f32.mrb[0].mxu0
    %v122 = vadd.f32 %v31, %v121
    %v123 = vpop.f32.mrb[0].mxu0
    %124 = vmatprep.mubr.f32.mxu0 0.0
    %125 = vmatmul.mubr.f32.gmra.mrb[0].mxu0 %v43
    %v126 = vpop.f32.mrb[0].mxu0
    %v127 = vadd.f32 %v31, %v126
    %v128 = vpop.f32.mrb[0].mxu0
    %129 = vdwg.mxu0
    %vm130 = vcmask 261120
    %v131 = vsel %vm130, %v112, 0.0
    %132 = vadd.xlane.f32.xlu0 %v131
    %v133 = vpop.xlane.xlu0 %132
    %v134 = vsel %vm130, %v117, 0.0
    %135 = vadd.xlane.f32.xlu0 %v134
    %v136 = vpop.xlane.xlu0 %135
    %v137 = vsel %vm130, %v122, 0.0
    %138 = vadd.xlane.f32.xlu0 %v137
    %v139 = vpop.xlane.xlu0 %138
    %v140 = vsel %vm130, %v127, 0.0
    %141 = vadd.xlane.f32.xlu0 %v140
    %v142 = vpop.xlane.xlu0 %141
    %v143 = vrcp.pop 32.0
    %v144 = vmul.f32 %v133, %v143
    %v145 = vmul.f32 %v136, %v143
    %v146 = vmul.f32 %v139, %v143
    %v147 = vmul.f32 %v142, %v143
    %v148 = vmul.f32 %v112, %v112
    %v149 = vmul.f32 %v117, %v117
    %v150 = vmul.f32 %v122, %v122
    %v151 = vmul.f32 %v127, %v127
    %v152 = vsel %vm130, %v148, 0.0
    %153 = vadd.xlane.f32.xlu0 %v152
    %v154 = vpop.xlane.xlu0 %153
    %v155 = vsel %vm130, %v149, 0.0
    %156 = vadd.xlane.f32.xlu0 %v155
    %v157 = vpop.xlane.xlu0 %156
    %v158 = vsel %vm130, %v150, 0.0
    %159 = vadd.xlane.f32.xlu0 %v158
    %v160 = vpop.xlane.xlu0 %159
    %v161 = vsel %vm130, %v151, 0.0
    %162 = vadd.xlane.f32.xlu0 %v161
    %v163 = vpop.xlane.xlu0 %162
    %v164 = vmul.f32 %v154, %v143
    %v165 = vmul.f32 %v157, %v143
    %v166 = vmul.f32 %v160, %v143
    %v167 = vmul.f32 %v163, %v143
    %v168 = vmul.f32 %v144, %v144
    %v169 = vmul.f32 %v145, %v145
    %v170 = vmul.f32 %v146, %v146
    %v171 = vmul.f32 %v147, %v147
    %v172 = vsub.f32 %v164, %v168
    %v173 = vsub.f32 %v165, %v169
    %v174 = vsub.f32 %v166, %v170
    %v175 = vsub.f32 %v167, %v171
    %v176 = vmax.f32 %v172, 0.0
    %v177 = vmax.f32 %v173, 0.0
    %v178 = vmax.f32 %v174, 0.0
    %v179 = vmax.f32 %v175, 0.0
    %v180 = vadd.f32 %v176, 1e-05
    %v181 = vadd.f32 %v177, 1e-05
    %v182 = vadd.f32 %v178, 1e-05
    %v183 = vadd.f32 %v179, 1e-05
    %v184 = vrsqrt.pop %v180
    %v185 = vrsqrt.pop %v181
    %v186 = vrsqrt.pop %v182
    %v187 = vrsqrt.pop %v183
    %v188 = vsub.f32 %v112, %v144
    %v189 = vsub.f32 %v117, %v145
    %v190 = vsub.f32 %v122, %v146
    %v191 = vsub.f32 %v127, %v147
    %v192 = vmul.f32 %v188, %v184
    %v193 = vmul.f32 %v189, %v185
    %v194 = vmul.f32 %v190, %v186
    %v195 = vmul.f32 %v191, %v187
    %v196 = vld [vmem:[%s2 + $0x1] sm:$0x1]
    %v197 = vlaneseq
    %v198 = vshrl.u32 %v197, 7
    %v199 = vsub.s32 0, %v198
    %v200 = vrot.slane %v196, %v199
    %v201 = vmul.f32 %v192, %v200
    %v202 = vmul.f32 %v193, %v200
    %v203 = vmul.f32 %v194, %v200
    %v204 = vmul.f32 %v195, %v200
    %v205 = vld [vmem:[%s2 + $0x2] sm:$0x1]
    %v206 = vlaneseq
    %v207 = vshrl.u32 %v206, 7
    %v208 = vsub.s32 0, %v207
    %v209 = vrot.slane %v205, %v208
    %v210 = vadd.f32 %v201, %v209
    %v211 = vadd.f32 %v202, %v209
    %v212 = vadd.f32 %v203, %v209
    %v213 = vadd.f32 %v204, %v209
    %214 = vst.msk [vmem:[#allocation2] sm:$0xff] %vm130, %v210
    %215 = vst.msk [vmem:[#allocation2 + $0x8] sm:$0xff] %vm130, %v211
    %216 = vst.msk [vmem:[#allocation2 + $0x10] sm:$0xff] %vm130, %v212
    %217 = vst.msk [vmem:[#allocation2 + $0x18] sm:$0xff] %vm130, %v213
    // Predicated region
    $region14: #{tpu_custom_call.1} parent=1 // pred_check
      _
    $region15: #{tpu_custom_call.1} parent=1 // pred_check_branch
      %219 = sbr.rel (0) target = $region17
    $region16: #{tpu_custom_call.1} parent=1 // pred_region
      %s221 = ssub.s32 512, 512
      %222 = vsyncadd [#allocation3], %s221
      %s223 = sshll.u32 [#allocation2], 4
      %s224 = int_to_ptr.vmem [resolvable:$true] %s223
      %229 = dma.vmem_to_hbm [thread:$0]  %s224, 512, %s3, [#allocation3], 128, 128, 8
    $region17: #{tpu_custom_call.1} parent=1 // pred_fallthru
      _
    // Predicated region
    $region18: #{tpu_custom_call.1} parent=1 // pred_check
      _
    $region19: #{tpu_custom_call.1} parent=1 // pred_check_branch
      %231 = sbr.rel (0) target = $region21
    $region20: #{tpu_custom_call.1} parent=1 // pred_region
      %232 = dma.done [#allocation3], 512
    $region21: #{tpu_custom_call.1} parent=1 // pred_fallthru
      _
    %233 = vsyncpa [#allocation3], 1

</llo_original>
